<compile_context>
chip_gen: v5e
topology: v5e:2x2
jax: 0.10.0
libtpu: 0.0.40
codegen_flags: <defaults>
</compile_context>

<pallas_src>
import functools

import jax
import jax.numpy as jnp
from jax import lax
from jax.experimental import pallas as pl
from jax.experimental.pallas import tpu as pltpu


def _device_kind():
    try:
        return jax.devices()[0].device_kind.lower()
    except Exception:
        return ""


def _vmem_budget_bytes(is_v7):
    """Usable VMEM budget per TensorCore (headroom left for the compiler)."""
    cap = 0
    try:
        info = pltpu.get_tpu_info()
        cap = int(getattr(info, "vmem_capacity_bytes", 0) or 0)
    except Exception:
        cap = 0
    if cap <= 0:
        cap = (64 << 20) if is_v7 else (128 << 20)
    # Guard: on v7x a per-chip (2-TC) readout would claim 128 MiB while the
    # physical per-core VMEM is 64 MiB.
    cap = min(cap, (64 << 20) if is_v7 else (128 << 20))
    return (cap * 3) // 4


def _softmax_last(t):
    """Row softmax over the last axis; approx reciprocal + one Newton step."""
    m = jnp.max(t, axis=-1, keepdims=True)
    e = jnp.exp(t - m)
    d = jnp.sum(e, axis=-1, keepdims=True)
    r = pl.reciprocal(d, approx=True)
    r = r * (2.0 - d * r)                 # near-exact denominator, still cheap
    return e * r


# -----------------------------------------------------------------------------
# Fused single-pass kernels.
# -----------------------------------------------------------------------------
def _fused_dense_kernel(x_ref, w_in_t_ref, b_in_ref, w_out_t_ref, b_out_ref,
                        o_ref, *, inv_len, n_channels, length):
    """x_ref/o_ref: (tb, C*L) -- channel-major lanes, no sublane padding."""
    C, L = n_channels, length
    # Per-channel means, accumulated in f32 (no f32 copy of the block).
    sums = [
        jnp.sum(x_ref[:, pl.ds(c * L, L)], axis=-1, keepdims=True,
                dtype=jnp.float32)
        for c in range(C)
    ]
    s = jnp.concatenate(sums, axis=-1) * inv_len                     # (tb, C)

    h = jnp.dot(s, w_in_t_ref[...], preferred_element_type=jnp.float32)
    h = h + b_in_ref[...]                                            # (tb, H)
    t = jnp.dot(h, w_out_t_ref[...], preferred_element_type=jnp.float32)
    t = jnp.tanh(t + b_out_ref[...])                                 # (tb, C)
    attn = _softmax_last(t)                                          # (tb, C)

    # Lane-dense scale: each channel slice scaled by its (tb, 1) weight.
    for c in range(C):
        xc = x_ref[:, pl.ds(c * L, L)]
        a_c = attn[:, c:c + 1].astype(xc.dtype)
        o_ref[:, pl.ds(c * L, L)] = (xc * a_c).astype(o_ref.dtype)


def _fused_kernel(x_ref, w_in_t_ref, b_in_ref, w_out_t_ref, b_out_ref, o_ref,
                  *, inv_len):
    """x_ref/o_ref: (tb, C, L); used when C already fills the sublanes."""
    # f32 accumulation without materializing an f32 copy of the block.
    s = jnp.sum(x_ref[...], axis=-1, dtype=jnp.float32) * inv_len    # (tb, C)
    h = jnp.dot(s, w_in_t_ref[...], preferred_element_type=jnp.float32)
    h = h + b_in_ref[...]
    t = jnp.dot(h, w_out_t_ref[...], preferred_element_type=jnp.float32)
    t = jnp.tanh(t + b_out_ref[...])
    attn = _softmax_last(t).astype(o_ref.dtype)                      # (tb, C)
    # NOTE: padded rows of a partial final batch block may hold garbage; all
    # math above is row-independent so they never contaminate valid rows and
    # are dropped by the clipped output writeback.
    o_ref[...] = (x_ref[...] * attn[:, :, None]).astype(o_ref.dtype)


# -----------------------------------------------------------------------------
# Two-pass fallback (row too large for VMEM).
# -----------------------------------------------------------------------------
def _stats_kernel(x_ref, w_in_ref, b_in_ref, w_out_ref, b_out_ref,
                  attn_ref, acc_ref, *, inv_len, length, tile_l):
    li = pl.program_id(1)
    nl = pl.num_programs(1)

    @pl.when(li == 0)
    def _init():
        acc_ref[...] = jnp.zeros_like(acc_ref)

    if length % tile_l != 0:
        @pl.when(li < nl - 1)
        def _full_tile():                                 # no mask on full tiles
            acc_ref[...] += jnp.sum(x_ref[0], axis=-1, keepdims=True,
                                    dtype=jnp.float32)

        @pl.when(li == nl - 1)
        def _partial_tile():                              # mask last tile only
            xb = x_ref[0]
            pos = li * tile_l + lax.broadcasted_iota(jnp.int32, xb.shape, 1)
            xb = jnp.where(pos < length, xb, jnp.zeros_like(xb))
            acc_ref[...] += jnp.sum(xb, axis=-1, keepdims=True,
                                    dtype=jnp.float32)
    else:
        acc_ref[...] += jnp.sum(x_ref[0], axis=-1, keepdims=True,
                                dtype=jnp.float32)

    @pl.when(li == nl - 1)
    def _finalize():
        # Tiny per-row MLP + softmax, channels on sublanes (no transposes);
        # runs once per batch row, hidden behind the streamed tiles.
        s = acc_ref[...] * inv_len                                    # (C, 1)
        h = jnp.dot(w_in_ref[...], s,
                    preferred_element_type=jnp.float32) + b_in_ref[...]   # (H,1)
        t = jnp.tanh(jnp.dot(w_out_ref[...], h,
                             preferred_element_type=jnp.float32)
                     + b_out_ref[...])                                # (C, 1)
        m = jnp.max(t, axis=0, keepdims=True)
        e = jnp.exp(t - m)
        d = jnp.sum(e, axis=0, keepdims=True)
        r = pl.reciprocal(d, approx=True)
        r = r * (2.0 - d * r)
        attn_ref[0] = e * r                                           # (C, 1)


def _scale_kernel(x_ref, a_ref, o_ref):
    # x_ref/o_ref: (tr, tl) dense rows of the (B*C, L) view; a_ref: (tr, 1).
    o_ref[...] = (x_ref[...] * a_ref[...].astype(x_ref.dtype)).astype(o_ref.dtype)


# -----------------------------------------------------------------------------
# Wrapper
# -----------------------------------------------------------------------------
def _choose_tb(batch, row_bytes, cap_bytes, is_v7, granule):
    """Batch rows per fused block; returns 0 if the granule can't be met."""
    tb = max(1, min(batch, cap_bytes // max(row_bytes, 1)))
    big = batch * row_bytes >= (4 << 20)
    if big and batch >= 2:
        # >=2 grid steps: DMA/compute overlap + both v7x TensorCores busy.
        tb = min(tb, -(-batch // 2))
        if is_v7 and batch >= 4:
            # >=2 steps per TensorCore -- megacore chip only.
            tb = min(tb, -(-batch // 4))
    if granule > 1 and tb < batch:
        tb = (tb // granule) * granule        # sublane granularity of 2-D blocks
    return tb


def channel_wise_attention(x, w_in, b_in, w_out, b_out, *, max_block_bytes=None):
    """x: (B, C, L). w_in: (H, C), b_in: (H,), w_out: (C, H), b_out: (C,)."""
    B, C, L = x.shape
    H = w_in.shape[0]
    assert w_in.shape == (H, C) and w_out.shape == (C, H)
    assert b_in.shape == (H,) and b_out.shape == (C,)

    itemsize = x.dtype.itemsize
    sub = max(8, 32 // itemsize)            # native sublane tile (8 f32, 16 bf16)
    c_pad = -(-C // sub) * sub              # sublane-padded channel count
    is_v7 = "v7" in _device_kind()
    budget = _vmem_budget_bytes(is_v7)
    vmem_limit = int(budget)
    # in + out double-buffered (4 live block copies) + temporaries/headroom.
    block_cap = budget // 6 if max_block_bytes is None else int(max_block_bytes)
    inv_len = 1.0 / L

    # ----------------- fused single pass: dense 2-D layout (small C) ---------
    if C < sub:
        row_bytes = C * L * itemsize                       # no sublane waste
        if row_bytes <= block_cap:
            tb = _choose_tb(B, row_bytes, block_cap, is_v7, granule=sub)
            if tb > 0:
                nb = -(-B // tb)
                kernel = functools.partial(
                    _fused_dense_kernel, inv_len=inv_len,
                    n_channels=C, length=L)
                out2 = pl.pallas_call(
                    kernel,
                    out_shape=jax.ShapeDtypeStruct((B, C * L), x.dtype),
                    grid=(nb,),
                    in_specs=[
                        pl.BlockSpec((tb, C * L), lambda b: (b, 0)),
                        pl.BlockSpec((C, H), lambda b: (0, 0)),     # W_in^T
                        pl.BlockSpec((1, H), lambda b: (0, 0)),     # b_in
                        pl.BlockSpec((H, C), lambda b: (0, 0)),     # W_out^T
                        pl.BlockSpec((1, C), lambda b: (0, 0)),     # b_out
                    ],
                    out_specs=pl.BlockSpec((tb, C * L), lambda b: (b, 0)),
                    compiler_params=pltpu.CompilerParams(
                        dimension_semantics=("parallel",),
                        vmem_limit_bytes=vmem_limit),
                )(x.reshape(B, C * L), jnp.asarray(w_in).T,
                  jnp.asarray(b_in).reshape(1, H), jnp.asarray(w_out).T,
                  jnp.asarray(b_out).reshape(1, C))
                return out2.reshape(B, C, L)

    # ----------------- fused single pass: 3-D layout --------------------------
    row_bytes = c_pad * L * itemsize                       # VMEM-padded row
    if row_bytes <= block_cap:
        tb = _choose_tb(B, row_bytes, block_cap, is_v7, granule=1)
        nb = -(-B // tb)
        kernel = functools.partial(_fused_kernel, inv_len=inv_len)
        return pl.pallas_call(
            kernel,
            out_shape=jax.ShapeDtypeStruct((B, C, L), x.dtype),
            grid=(nb,),
            in_specs=[
                pl.BlockSpec((tb, C, L), lambda b: (b, 0, 0)),
                pl.BlockSpec((C, H), lambda b: (0, 0)),             # W_in^T
                pl.BlockSpec((1, H), lambda b: (0, 0)),             # b_in
                pl.BlockSpec((H, C), lambda b: (0, 0)),             # W_out^T
                pl.BlockSpec((1, C), lambda b: (0, 0)),             # b_out
            ],
            out_specs=pl.BlockSpec((tb, C, L), lambda b: (b, 0, 0)),
            compiler_params=pltpu.CompilerParams(
                dimension_semantics=("parallel",),
                vmem_limit_bytes=vmem_limit),
        )(x, jnp.asarray(w_in).T, jnp.asarray(b_in).reshape(1, H),
          jnp.asarray(w_out).T, jnp.asarray(b_out).reshape(1, C))

    # ----------------- two-pass fallback (large C*L) --------------------------
    # TODO(synk): the stats pass keeps the full channel axis in one block (no
    # C tiling); fine for realistic channel counts, would OOM for enormous C.
    stats_bytes = (budget * 2) // 5          # only the input is double-buffered
    scale_bytes = budget // 5                # input + output double-buffered
    if max_block_bytes is not None:
        stats_bytes = min(stats_bytes, int(max_block_bytes))
        scale_bytes = min(scale_bytes, int(max_block_bytes))

    # Pass 1: L-streamed stats -> (B, C, 1) attention weights.
    tl_s = min(L, max(128, (stats_bytes // (c_pad * itemsize)) // 128 * 128))
    nl_s = -(-L // tl_s)
    stats_kernel = functools.partial(
        _stats_kernel, inv_len=inv_len, length=L, tile_l=tl_s)
    attn = pl.pallas_call(
        stats_kernel,
        out_shape=jax.ShapeDtypeStruct((B, C, 1), jnp.float32),
        grid=(B, nl_s),
        in_specs=[
            pl.BlockSpec((1, C, tl_s), lambda b, l: (b, 0, l)),     # x stream
            pl.BlockSpec((H, C), lambda b, l: (0, 0)),              # W_in (resident)
            pl.BlockSpec((H, 1), lambda b, l: (0, 0)),              # b_in
            pl.BlockSpec((C, H), lambda b, l: (0, 0)),              # W_out (resident)
            pl.BlockSpec((C, 1), lambda b, l: (0, 0)),              # b_out
        ],
        out_specs=pl.BlockSpec((1, C, 1), lambda b, l: (b, 0, 0)),
        scratch_shapes=[pltpu.VMEM((C, 1), jnp.float32)],           # running sum
        compiler_params=pltpu.CompilerParams(
            dimension_semantics=("parallel", "arbitrary"),
            vmem_limit_bytes=vmem_limit),
    )(x, jnp.asarray(w_in), jnp.asarray(b_in).reshape(H, 1),
      jnp.asarray(w_out), jnp.asarray(b_out).reshape(C, 1))

    # Pass 2: dense (B*C, L) broadcast multiply (no sublane waste, fully
    # parallel grid, lane-dense stores).
    R = B * C
    tr = R if R <= sub else sub
    tl_x = min(L, max(128, (scale_bytes // (tr * itemsize)) // 128 * 128))
    if tl_x >= L and tr < R:
        tl_x = L
        tr_fit = scale_bytes // max(L * itemsize, 1)
        tr = R if tr_fit >= R else max(sub, (tr_fit // sub) * sub)
    nr = -(-R // tr)
    nl_x = -(-L // tl_x)

    out2 = pl.pallas_call(
        _scale_kernel,
        out_shape=jax.ShapeDtypeStruct((R, L), x.dtype),
        grid=(nr, nl_x),
        in_specs=[
            pl.BlockSpec((tr, tl_x), lambda r, l: (r, l)),
            pl.BlockSpec((tr, 1), lambda r, l: (r, 0)),
        ],
        out_specs=pl.BlockSpec((tr, tl_x), lambda r, l: (r, l)),
        compiler_params=pltpu.CompilerParams(
            dimension_semantics=("parallel", "parallel"),
            vmem_limit_bytes=vmem_limit),
    )(x.reshape(R, L), attn.reshape(R, 1))
    return out2.reshape(B, C, L)


def _reference(x, w_in, b_in, w_out, b_out):
    # pure-JAX reference mirroring the PyTorch forward
    s = jnp.mean(x, axis=-1)                     # (B, C)
    s = s @ w_in.T + b_in                        # (B, H)
    s = jnp.tanh(s @ w_out.T + b_out)            # (B, C)
    a = jax.nn.softmax(s, axis=-1)[..., None]    # (B, C, 1)
    return x * a


if __name__ == "__main__":
    key = jax.random.PRNGKey(0)
    keys = jax.random.split(key, 15)

    # ---- 1) fused dense path (small C, the spectrogram use case) ----
    B, C, H, L = 2, 4, 32, 16
    x = jax.random.normal(keys[0], (B, C, L), dtype=jnp.float32)
    bi, bo = 1.0 / (C ** 0.5), 1.0 / (H ** 0.5)
    w_in = jax.random.uniform(keys[1], (H, C), jnp.float32, -bi, bi)
    b_in = jax.random.uniform(keys[2], (H,), jnp.float32, -bi, bi)
    w_out = jax.random.uniform(keys[3], (C, H), jnp.float32, -bo, bo)
    b_out = jax.random.uniform(keys[4], (C,), jnp.float32, -bo, bo)
    out = jax.block_until_ready(channel_wise_attention(x, w_in, b_in, w_out, b_out))
    ref = _reference(x, w_in, b_in, w_out, b_out)
    assert out.shape == (B, C, L)
    assert jnp.allclose(out, ref, atol=2e-3, rtol=2e-3), "dense fused mismatch"

    # ---- 2) fused 3-D path (C fills the sublanes) ----
    B2, C2, L2 = 3, 8, 160
    bi2 = 1.0 / (C2 ** 0.5)
    x2 = jax.random.normal(keys[5], (B2, C2, L2), dtype=jnp.float32)
    w_in2 = jax.random.uniform(keys[6], (H, C2), jnp.float32, -bi2, bi2)
    b_in2 = jax.random.uniform(keys[7], (H,), jnp.float32, -bi2, bi2)
    w_out2 = jax.random.uniform(keys[8], (C2, H), jnp.float32, -bo, bo)
    b_out2 = jax.random.uniform(keys[9], (C2,), jnp.float32, -bo, bo)
    out2 = jax.block_until_ready(
        channel_wise_attention(x2, w_in2, b_in2, w_out2, b_out2))
    ref2 = _reference(x2, w_in2, b_in2, w_out2, b_out2)
    assert out2.shape == (B2, C2, L2)
    assert jnp.allclose(out2, ref2, atol=2e-3, rtol=2e-3), "3-D fused mismatch"

    # ---- 3) two-pass fallback (forced), incl. last-tile masking ----
    B3, C3, L3 = 2, 4, 400
    bi3 = 1.0 / (C3 ** 0.5)
    x3 = jax.random.normal(keys[10], (B3, C3, L3), dtype=jnp.float32)
    w_in3 = jax.random.uniform(keys[11], (H, C3), jnp.float32, -bi3, bi3)
    b_in3 = jax.random.uniform(keys[12], (H,), jnp.float32, -bi3, bi3)
    w_out3 = jax.random.uniform(keys[13], (C3, H), jnp.float32, -bo, bo)
    b_out3 = jax.random.uniform(keys[14], (C3,), jnp.float32, -bo, bo)
    out3 = jax.block_until_ready(
        channel_wise_attention(x3, w_in3, b_in3, w_out3, b_out3,
                               max_block_bytes=2048))   # force two-pass path
    ref3 = _reference(x3, w_in3, b_in3, w_out3, b_out3)
    assert out3.shape == (B3, C3, L3)
    assert jnp.allclose(out3, ref3, atol=2e-3, rtol=2e-3), "two-pass mismatch"

    print("KERNEL_OK")
</pallas_src>

<mosaic_0001>
module attributes {stable_mosaic.version = 11 : i64} {
  func.func @_fused_dense_kernel(%arg0: i32, %arg1: memref<2x64xf32, #tpu.memory_space<vmem>>, %arg2: memref<4x32xf32, #tpu.memory_space<vmem>>, %arg3: memref<1x32xf32, #tpu.memory_space<vmem>>, %arg4: memref<32x4xf32, #tpu.memory_space<vmem>>, %arg5: memref<1x4xf32, #tpu.memory_space<vmem>>, %arg6: memref<2x64xf32, #tpu.memory_space<vmem>>) attributes {dimension_semantics = [#tpu.dimension_semantics<parallel>], iteration_bounds = array<i64: 1>, scalar_prefetch = 0 : i64, scratch_operands = 0 : i64, tpu.core_type = #tpu.core_type<tc>, window_params = [{transform_indices = @transform_0, window_bounds = array<i64: 2, 64>}, {pipeline_mode = #tpu.pipeline_mode<synchronous>, transform_indices = @transform_1, window_bounds = array<i64: 4, 32>}, {pipeline_mode = #tpu.pipeline_mode<synchronous>, transform_indices = @transform_2, window_bounds = array<i64: 1, 32>}, {pipeline_mode = #tpu.pipeline_mode<synchronous>, transform_indices = @transform_3, window_bounds = array<i64: 32, 4>}, {pipeline_mode = #tpu.pipeline_mode<synchronous>, transform_indices = @transform_4, window_bounds = array<i64: 1, 4>}, {transform_indices = @transform_5, window_bounds = array<i64: 2, 64>}]} {
    %c0 = arith.constant 0 : index
    %c0_0 = arith.constant 0 : index
    %0 = vector.load %arg1[%c0, %c0_0] : memref<2x64xf32, #tpu.memory_space<vmem>>, vector<2x16xf32>
    %cst = arith.constant dense<0.000000e+00> : vector<2xf32>
    %1 = vector.multi_reduction <add>, %0, %cst [1] : vector<2x16xf32> to vector<2xf32>
    %2 = vector.shape_cast %1 : vector<2xf32> to vector<2x1xf32>
    %c0_1 = arith.constant 0 : index
    %c16 = arith.constant 16 : index
    %3 = vector.load %arg1[%c0_1, %c16] : memref<2x64xf32, #tpu.memory_space<vmem>>, vector<2x16xf32>
    %cst_2 = arith.constant dense<0.000000e+00> : vector<2xf32>
    %4 = vector.multi_reduction <add>, %3, %cst_2 [1] : vector<2x16xf32> to vector<2xf32>
    %5 = vector.shape_cast %4 : vector<2xf32> to vector<2x1xf32>
    %c0_3 = arith.constant 0 : index
    %c32 = arith.constant 32 : index
    %6 = vector.load %arg1[%c0_3, %c32] : memref<2x64xf32, #tpu.memory_space<vmem>>, vector<2x16xf32>
    %cst_4 = arith.constant dense<0.000000e+00> : vector<2xf32>
    %7 = vector.multi_reduction <add>, %6, %cst_4 [1] : vector<2x16xf32> to vector<2xf32>
    %8 = vector.shape_cast %7 : vector<2xf32> to vector<2x1xf32>
    %c0_5 = arith.constant 0 : index
    %c48 = arith.constant 48 : index
    %9 = vector.load %arg1[%c0_5, %c48] : memref<2x64xf32, #tpu.memory_space<vmem>>, vector<2x16xf32>
    %cst_6 = arith.constant dense<0.000000e+00> : vector<2xf32>
    %10 = vector.multi_reduction <add>, %9, %cst_6 [1] : vector<2x16xf32> to vector<2xf32>
    %11 = vector.shape_cast %10 : vector<2xf32> to vector<2x1xf32>
    %12 = tpu.concatenate %2, %5, %8, %11 in 1 : vector<2x1xf32>, vector<2x1xf32>, vector<2x1xf32>, vector<2x1xf32> -> vector<2x4xf32>
    %cst_7 = arith.constant 6.250000e-02 : f32
    %13 = vector.broadcast %cst_7 : f32 to vector<2x4xf32>
    %14 = arith.mulf %12, %13 : vector<2x4xf32>
    %c0_8 = arith.constant 0 : index
    %c0_9 = arith.constant 0 : index
    %15 = vector.load %arg2[%c0_8, %c0_9] : memref<4x32xf32, #tpu.memory_space<vmem>>, vector<4x32xf32>
    %cst_10 = arith.constant dense<0.000000e+00> : vector<2x32xf32>
    %16 = tpu.matmul %14, %15, %cst_10 {dimension_numbers = #tpu.dot_dimension_numbers<[1], [0], [0], [1], [0, 0, 1, 1], [], []>} : vector<2x4xf32>, vector<4x32xf32>, vector<2x32xf32> -> vector<2x32xf32>
    %c0_11 = arith.constant 0 : index
    %c0_12 = arith.constant 0 : index
    %17 = vector.load %arg3[%c0_11, %c0_12] : memref<1x32xf32, #tpu.memory_space<vmem>>, vector<1x32xf32>
    %18 = vector.broadcast %17 : vector<1x32xf32> to vector<2x32xf32>
    %19 = arith.addf %16, %18 : vector<2x32xf32>
    %c0_13 = arith.constant 0 : index
    %c0_14 = arith.constant 0 : index
    %20 = vector.load %arg4[%c0_13, %c0_14] : memref<32x4xf32, #tpu.memory_space<vmem>>, vector<32x4xf32>
    %cst_15 = arith.constant dense<0.000000e+00> : vector<2x4xf32>
    %21 = tpu.matmul %19, %20, %cst_15 {dimension_numbers = #tpu.dot_dimension_numbers<[1], [0], [0], [1], [0, 0, 1, 1], [], []>} : vector<2x32xf32>, vector<32x4xf32>, vector<2x4xf32> -> vector<2x4xf32>
    %c0_16 = arith.constant 0 : index
    %c0_17 = arith.constant 0 : index
    %22 = vector.load %arg5[%c0_16, %c0_17] : memref<1x4xf32, #tpu.memory_space<vmem>>, vector<1x4xf32>
    %23 = vector.broadcast %22 : vector<1x4xf32> to vector<2x4xf32>
    %24 = arith.addf %21, %23 : vector<2x4xf32>
    %25 = math.tanh %24 : vector<2x4xf32>
    %cst_18 = arith.constant dense<0xFF800000> : vector<2xf32>
    %26 = vector.multi_reduction <maximumf>, %25, %cst_18 [1] : vector<2x4xf32> to vector<2xf32>
    %27 = vector.shape_cast %26 : vector<2xf32> to vector<2x1xf32>
    %28 = vector.broadcast %27 : vector<2x1xf32> to vector<2x4xf32>
    %29 = arith.subf %25, %28 : vector<2x4xf32>
    %30 = math.exp %29 : vector<2x4xf32>
    %cst_19 = arith.constant dense<0.000000e+00> : vector<2xf32>
    %31 = vector.multi_reduction <add>, %30, %cst_19 [1] : vector<2x4xf32> to vector<2xf32>
    %32 = vector.shape_cast %31 : vector<2xf32> to vector<2x1xf32>
    %33 = tpu.reciprocal %32 {approx = true} : vector<2x1xf32> -> vector<2x1xf32>
    %34 = arith.mulf %32, %33 : vector<2x1xf32>
    %cst_20 = arith.constant 2.000000e+00 : f32
    %35 = vector.broadcast %cst_20 : f32 to vector<2x1xf32>
    %36 = arith.subf %35, %34 : vector<2x1xf32>
    %37 = arith.mulf %33, %36 : vector<2x1xf32>
    %38 = vector.broadcast %37 : vector<2x1xf32> to vector<2x4xf32>
    %39 = arith.mulf %30, %38 : vector<2x4xf32>
    %c0_21 = arith.constant 0 : index
    %c0_22 = arith.constant 0 : index
    %40 = vector.load %arg1[%c0_21, %c0_22] : memref<2x64xf32, #tpu.memory_space<vmem>>, vector<2x16xf32>
    %41 = vector.extract_strided_slice %39 {offsets = [0, 0], sizes = [2, 1], strides = [1, 1]} : vector<2x4xf32> to vector<2x1xf32>
    %42 = vector.broadcast %41 : vector<2x1xf32> to vector<2x16xf32>
    %43 = arith.mulf %40, %42 : vector<2x16xf32>
    %c0_23 = arith.constant 0 : index
    %c0_24 = arith.constant 0 : index
    %44 = vector.load %arg6[%c0_23, %c0_24] : memref<2x64xf32, #tpu.memory_space<vmem>>, vector<2x16xf32>
    tpu.vector_store %arg6[%c0_23, %c0_24], %43 {strides = array<i32>} : memref<2x64xf32, #tpu.memory_space<vmem>>, vector<2x16xf32>,
    %c0_25 = arith.constant 0 : index
    %c16_26 = arith.constant 16 : index
    %45 = vector.load %arg1[%c0_25, %c16_26] : memref<2x64xf32, #tpu.memory_space<vmem>>, vector<2x16xf32>
    %46 = vector.extract_strided_slice %39 {offsets = [0, 1], sizes = [2, 1], strides = [1, 1]} : vector<2x4xf32> to vector<2x1xf32>
    %47 = vector.broadcast %46 : vector<2x1xf32> to vector<2x16xf32>
    %48 = arith.mulf %45, %47 : vector<2x16xf32>
    %c0_27 = arith.constant 0 : index
    %c16_28 = arith.constant 16 : index
    %49 = vector.load %arg6[%c0_27, %c16_28] : memref<2x64xf32, #tpu.memory_space<vmem>>, vector<2x16xf32>
    tpu.vector_store %arg6[%c0_27, %c16_28], %48 {strides = array<i32>} : memref<2x64xf32, #tpu.memory_space<vmem>>, vector<2x16xf32>,
    %c0_29 = arith.constant 0 : index
    %c32_30 = arith.constant 32 : index
    %50 = vector.load %arg1[%c0_29, %c32_30] : memref<2x64xf32, #tpu.memory_space<vmem>>, vector<2x16xf32>
    %51 = vector.extract_strided_slice %39 {offsets = [0, 2], sizes = [2, 1], strides = [1, 1]} : vector<2x4xf32> to vector<2x1xf32>
    %52 = vector.broadcast %51 : vector<2x1xf32> to vector<2x16xf32>
    %53 = arith.mulf %50, %52 : vector<2x16xf32>
    %c0_31 = arith.constant 0 : index
    %c32_32 = arith.constant 32 : index
    %54 = vector.load %arg6[%c0_31, %c32_32] : memref<2x64xf32, #tpu.memory_space<vmem>>, vector<2x16xf32>
    tpu.vector_store %arg6[%c0_31, %c32_32], %53 {strides = array<i32>} : memref<2x64xf32, #tpu.memory_space<vmem>>, vector<2x16xf32>,
    %c0_33 = arith.constant 0 : index
    %c48_34 = arith.constant 48 : index
    %55 = vector.load %arg1[%c0_33, %c48_34] : memref<2x64xf32, #tpu.memory_space<vmem>>, vector<2x16xf32>
    %56 = vector.extract_strided_slice %39 {offsets = [0, 3], sizes = [2, 1], strides = [1, 1]} : vector<2x4xf32> to vector<2x1xf32>
    %57 = vector.broadcast %56 : vector<2x1xf32> to vector<2x16xf32>
    %58 = arith.mulf %55, %57 : vector<2x16xf32>
    %c0_35 = arith.constant 0 : index
    %c48_36 = arith.constant 48 : index
    %59 = vector.load %arg6[%c0_35, %c48_36] : memref<2x64xf32, #tpu.memory_space<vmem>>, vector<2x16xf32>
    tpu.vector_store %arg6[%c0_35, %c48_36], %58 {strides = array<i32>} : memref<2x64xf32, #tpu.memory_space<vmem>>, vector<2x16xf32>,
    return
  }
  func.func @transform_0(%arg0: i32) -> (i32, i32) {
    %c0_i32 = arith.constant 0 : i32
    %c0_i32_0 = arith.constant 0 : i32
    return %arg0, %c0_i32 : i32, i32
  }
  func.func @transform_1(%arg0: i32) -> (i32, i32) {
    %c0_i32 = arith.constant 0 : i32
    %c0_i32_0 = arith.constant 0 : i32
    %c0_i32_1 = arith.constant 0 : i32
    return %c0_i32, %c0_i32_0 : i32, i32
  }
  func.func @transform_2(%arg0: i32) -> (i32, i32) {
    %c0_i32 = arith.constant 0 : i32
    %c0_i32_0 = arith.constant 0 : i32
    %c0_i32_1 = arith.constant 0 : i32
    return %c0_i32, %c0_i32_0 : i32, i32
  }
  func.func @transform_3(%arg0: i32) -> (i32, i32) {
    %c0_i32 = arith.constant 0 : i32
    %c0_i32_0 = arith.constant 0 : i32
    %c0_i32_1 = arith.constant 0 : i32
    return %c0_i32, %c0_i32_0 : i32, i32
  }
  func.func @transform_4(%arg0: i32) -> (i32, i32) {
    %c0_i32 = arith.constant 0 : i32
    %c0_i32_0 = arith.constant 0 : i32
    %c0_i32_1 = arith.constant 0 : i32
    return %c0_i32, %c0_i32_0 : i32, i32
  }
  func.func @transform_5(%arg0: i32) -> (i32, i32) {
    %c0_i32 = arith.constant 0 : i32
    %c0_i32_0 = arith.constant 0 : i32
    return %arg0, %c0_i32 : i32, i32
  }
}

</mosaic_0001>

<llo_original>
// kernel: tpu_custom_call.1
$region0: #{tpu_custom_call.1}
  #allocation0 [shape = 'u32[]', space=smem, size = 0x4, offset = 0x4, fixed_abs, tag = 'smem constant byte address 0x4 - core index']
  #allocation1 [shape = 'u32[72,128]{1,0:T(1,128)}', space=vmem, size = 0x9000, scoped, tag = 'internal scratch']
  %s0 = inlined_call_operand.vmem [shape: f32[2,64], index: 0, kind: input, shape index: {}]
  %s1 = inlined_call_operand.vmem [shape: f32[4,32], index: 1, kind: input, shape index: {}]
  %s2 = inlined_call_operand.vmem [shape: f32[1,32], index: 2, kind: input, shape index: {}]
  %s3 = inlined_call_operand.vmem [shape: f32[32,4], index: 3, kind: input, shape index: {}]
  %s4 = inlined_call_operand.vmem [shape: f32[1,4], index: 4, kind: input, shape index: {}]
  %s5 = inlined_call_operand.hbm [shape: f32[2,64], index: 5, kind: output, shape index: {}]
  %s6 = sld [smem:[#allocation0]]
  $region30: #{tpu_custom_call.1} parent=0
    _
  %s8 = ssub.s32 1, %s6
  %s9 = scalar_select 0, %s8, %s6
  $region1: #{tpu_custom_call.1} parent=0
    #allocation2 [shape = 'u8[1024]{0}', space=vmem, size = 0x400, scoped, tag = 'output window, operand 0, single buffered']
    #allocation3 [shape = 's32[1]{0}', space=sflag, size = 0x4, scoped, tag = 'scoped memory for tpu_custom_call.1']
    %10 = vsyncpa [#allocation3], 0
    // Predicated region
    $region2: #{tpu_custom_call.1} parent=1 // pred_check
      _
    $region3: #{tpu_custom_call.1} parent=1 // pred_check_branch
      %12 = sbr.rel (0) target = $region5
    $region4: #{tpu_custom_call.1} parent=1 // pred_region
      _
    $region5: #{tpu_custom_call.1} parent=1 // pred_fallthru
      _
    // Predicated region
    $region6: #{tpu_custom_call.1} parent=1 // pred_check
      _
    $region7: #{tpu_custom_call.1} parent=1 // pred_check_branch
      %14 = sbr.rel (0) target = $region9
    $region8: #{tpu_custom_call.1} parent=1 // pred_region
      _
    $region9: #{tpu_custom_call.1} parent=1 // pred_fallthru
      _
    // Predicated region
    $region10: #{tpu_custom_call.1} parent=1 // pred_check
      _
    $region11: #{tpu_custom_call.1} parent=1 // pred_check_branch
      %16 = sbr.rel (0) target = $region13
    $region12: #{tpu_custom_call.1} parent=1 // pred_region
      _
    $region13: #{tpu_custom_call.1} parent=1 // pred_fallthru
      _
    // Predicated region
    $region14: #{tpu_custom_call.1} parent=1 // pred_check
      _
    $region15: #{tpu_custom_call.1} parent=1 // pred_check_branch
      %18 = sbr.rel (0) target = $region17
    $region16: #{tpu_custom_call.1} parent=1 // pred_region
      _
    $region17: #{tpu_custom_call.1} parent=1 // pred_fallthru
      _
    // Predicated region
    $region18: #{tpu_custom_call.1} parent=1 // pred_check
      _
    $region19: #{tpu_custom_call.1} parent=1 // pred_check_branch
      %20 = sbr.rel (0) target = $region21
    $region20: #{tpu_custom_call.1} parent=1 // pred_region
      _
    $region21: #{tpu_custom_call.1} parent=1 // pred_fallthru
      _
    %v21 = vld [vmem:[%s0] sm:$0x3]
    %vm22 = vcmask 123904
    %v23 = vsel %vm22, %v21, 0.0
    %24 = vadd.xlane.f32.xlu0 %v23
    %v25 = vpop.xlane.xlu0 %24
    %27 = vrot.lane.b32.xlu0 %v21, 112
    %v28 = vpop.permute.xlu0 %27
    %v30 = vsel %vm22, %v28, 0.0
    %31 = vadd.xlane.f32.xlu0 %v30
    %v32 = vpop.xlane.xlu0 %31
    %33 = vrot.lane.b32.xlu0 %v21, 96
    %v34 = vpop.permute.xlu0 %33
    %v36 = vsel %vm22, %v34, 0.0
    %37 = vadd.xlane.f32.xlu0 %v36
    %v38 = vpop.xlane.xlu0 %37
    %39 = vrot.lane.b32.xlu0 %v21, 80
    %v40 = vpop.permute.xlu0 %39
    %v42 = vsel %vm22, %v40, 0.0
    %43 = vadd.xlane.f32.xlu0 %v42
    %v44 = vpop.xlane.xlu0 %43
    %vm45 = vcmask 7168
    %v46 = vsel %vm45, %v25, %v32
    %vm47 = vcmask 15360
    %v48 = vsel %vm47, %v46, %v38
    %vm49 = vcmask 23552
    %v50 = vsel %vm49, %v48, %v44
    %v51 = vmul.f32 %v50, 0.0625
    %v52 = vld [vmem:[%s1] sm:$0xf]
    %v53 = vld [vmem:[%s2] sm:$0x1]
    %v55 = vperm.slane %v53, 0
    %vm57 = vcmask 31744
    %v59 = vsel %vm57, %v51, 0
    %vm61 = vcmask 1043456
    %v63 = vsel %vm61, %v52, 0
    %65 = vmatpush.msra.mxu0 0.0
    %66 = vmatpush.msra.mxu0 0.0
    %67 = vmatpush.msra.mxu0 0.0
    %68 = vmatpush.msra.mxu0 0.0
    %69 = vmatpush.msra.mxu0 0.0
    %70 = vmatpush.msra.mxu0 0.0
    %71 = vmatpush.msra.mxu0 0.0
    %72 = vmatpush.msra.mxu0 0.0
    %73 = vmatpush.msra.mxu0 0.0
    %74 = vmatpush.msra.mxu0 0.0
    %75 = vmatpush.msra.mxu0 0.0
    %76 = vmatpush.msra.mxu0 0.0
    %77 = vmatpush.msra.mxu0 0.0
    %78 = vmatpush.msra.mxu0 0.0
    %79 = vmatpush.msra.mxu0 0.0
    %80 = vmatpush.msra.mxu0 %v63
    %81 = vmatmul.f32.gmra.mxu0 %v59
    %v82 = vpop.f32.mrf.mxu0
    %v83 = vadd.f32 %v55, %v82
    %84 = vdwg.mxu0
    %v85 = vld [vmem:[%s3] sm:$0xff]
    %v86 = vld [vmem:[%s3 + $0x8] sm:$0xff]
    %v87 = vld [vmem:[%s3 + $0x10] sm:$0xff]
    %v88 = vld [vmem:[%s3 + $0x18] sm:$0xff]
    %v89 = vld [vmem:[%s4] sm:$0x1]
    %v91 = vperm.slane %v89, 0
    %vm93 = vcmask 261120
    %v95 = vsel %vm93, %v83, 0
    %97 = vmatpush.msra.mxu0 0.0
    %98 = vmatpush.msra.mxu0 0.0
    %99 = vmatpush.msra.mxu0 0.0
    %100 = vmatpush.msra.mxu0 0.0
    %101 = vmatpush.msra.mxu0 0.0
    %102 = vmatpush.msra.mxu0 0.0
    %103 = vmatpush.msra.mxu0 0.0
    %104 = vmatpush.msra.mxu0 0.0
    %105 = vmatpush.msra.mxu0 0.0
    %106 = vmatpush.msra.mxu0 0.0
    %107 = vmatpush.msra.mxu0 0.0
    %108 = vmatpush.msra.mxu0 0.0
    %109 = vmatpush.msra.mxu0 %v88
    %110 = vmatpush.msra.mxu0 %v87
    %111 = vmatpush.msra.mxu0 %v86
    %112 = vmatpush.msra.mxu0 %v85
    %113 = vmatmul.f32.gmra.mxu0 %v95
    %v114 = vpop.f32.mrf.mxu0
    %v115 = vadd.f32 %v91, %v114
    %116 = vdwg.mxu0
    %v117 = vtanh.pop %v115
    %vm118 = vcmask 25600
    %v119 = vsel %vm118, %v117, -inf
    %120 = vmax.xlane.f32.xlu0 %v119
    %v121 = vpop.xlane.xlu0 %120
    %v122 = vsub.f32 %v117, %v121
    %v123 = vmul.f32 %v122, 1.442695
    %v124 = vpow.pop %v123
    %v125 = vsel %vm118, %v124, 0.0
    %126 = vadd.xlane.f32.xlu0 %v125
    %v127 = vpop.xlane.xlu0 %126
    %v128 = vrcp.pop %v127
    %v129 = vmul.f32 %v127, %v128
    %v130 = vsub.f32 2.0, %v129
    %v131 = vmul.f32 %v128, %v130
    %v132 = vmul.f32 %v124, %v131
    %134 = vset.pattern.permute.xlu0 0
    %135 = vperm.xlu0 %134, %v132
    %v136 = vpop.permute.xlu0 %135
    %v138 = vmul.f32 %v21, %v136
    %139 = vst.msk [vmem:[#allocation2] sm:$0x3] %vm22, %v138
    %v140 = vld [vmem:[%s0] sm:$0x3]
    %141 = vset.pattern.permute.xlu0 1
    %142 = vperm.xlu0 %141, %v132
    %v143 = vpop.permute.xlu0 %142
    %v145 = vmul.f32 %v140, %v143
    %vm146 = vcmask 255104
    %147 = vst.msk [vmem:[#allocation2] sm:$0x3] %vm146, %v145
    %v148 = vld [vmem:[%s0] sm:$0x3]
    %149 = vset.pattern.permute.xlu0 2
    %150 = vperm.xlu0 %149, %v132
    %v151 = vpop.permute.xlu0 %150
    %v153 = vmul.f32 %v148, %v151
    %vm154 = vcmask 386304
    %155 = vst.msk [vmem:[#allocation2] sm:$0x3] %vm154, %v153
    %v156 = vld [vmem:[%s0] sm:$0x3]
    %157 = vset.pattern.permute.xlu0 3
    %158 = vperm.xlu0 %157, %v132
    %v159 = vpop.permute.xlu0 %158
    %v161 = vmul.f32 %v156, %v159
    %vm162 = vcmask 517504
    %163 = vst.msk [vmem:[#allocation2] sm:$0x3] %vm162, %v161
    // Predicated region
    $region22: #{tpu_custom_call.1} parent=1 // pred_check
      _
    $region23: #{tpu_custom_call.1} parent=1 // pred_check_branch
      %165 = sbr.rel (0) target = $region25
    $region24: #{tpu_custom_call.1} parent=1 // pred_region
      %167 = vsyncadd [#allocation3], 0
      %s169 = sshll.u32 [#allocation2], 4
      %s170 = int_to_ptr.vmem [resolvable:$true] %s169
      %s171 = sshll.u32 %s5, 4
      %s172 = int_to_ptr.hbm [resolvable:$true] %s171
      %174 = dma.vmem_to_hbm [thread:$0]  %s170, 32, %s172, [#allocation3]
    $region25: #{tpu_custom_call.1} parent=1 // pred_fallthru
      _
    // Predicated region
    $region26: #{tpu_custom_call.1} parent=1 // pred_check
      _
    $region27: #{tpu_custom_call.1} parent=1 // pred_check_branch
      %176 = sbr.rel (0) target = $region29
    $region28: #{tpu_custom_call.1} parent=1 // pred_region
      %178 = dma.done [#allocation3], 32
    $region29: #{tpu_custom_call.1} parent=1 // pred_fallthru
      _
    %179 = vsyncpa [#allocation3], 1

</llo_original>
